<compile_context>
chip_gen: v7x
topology: tpu7x:2x2x1
jax: 0.10.0
libtpu: 0.0.40
codegen_flags: <defaults>
</compile_context>

<pallas_src>
import functools

import jax
import jax.numpy as jnp
from jax.experimental import pallas as pl
from jax.experimental.pallas import tpu as pltpu


# ----------------------------- kernels ------------------------------------ #

def _poss_kernel(xs_ref, w1_ref, b1_ref, w2_ref, b2_ref, u_ref, poss_ref, *,
                 inv_temp):
    """Per-feature keep-probabilities, feature-major (F on lanes).

    xs : [S, F]   sampled node rows (x[idx]), F lane-dense
    w1 : [Hd, S]  Linear1 weight (PyTorch layout), b1: [Hd, 1]
    w2 : [1, Hd]  Linear2 weight,                 b2: [1, 1]
    u  : [1, F]   uniform noise driving the Gumbel samples
    out: [1, F]   possibilities
    """
    # H^T = W1 @ x[idx] + b1   (== (x[idx].T @ W1.T + b1) transposed)
    h = jnp.dot(w1_ref[...], xs_ref[...],
                preferred_element_type=jnp.float32) + b1_ref[...]
    h = jnp.maximum(h, 0.0)                                   # ReLU

    # logits^T = W2 @ ReLU(H^T) + b2   -> [1, F], lane-dense
    logits = jnp.dot(w2_ref[...], h,
                     preferred_element_type=jnp.float32) + b2_ref[...]

    # gumbel(u) = -log(-log(u));  possibilities = sigmoid((logits + g)/temp)
    g = -jnp.log(-jnp.log(u_ref[...]))
    poss_ref[...] = jax.nn.sigmoid((logits + g) * inv_temp)


def _drop_kernel(x_ref, poss_ref, out_ref):
    """x' = x * possibilities, broadcast over rows; fully lane-dense."""
    out_ref[...] = x_ref[...] * poss_ref[...]


# ----------------------------- wrapper ------------------------------------ #

def _row_tile(n_rows, n_feat, itemsize=4, max_tile_bytes=8 << 20):
    """Row-tile size: >=2 parallel tiles when possible (v7x has 2 TCs),
    each tile a multiple of 8 rows and under a VMEM budget."""
    tn = n_rows
    if n_rows % 16 == 0:
        tn = n_rows // 2                      # at least 2 parallel grid steps
    while tn % 16 == 0 and tn * n_feat * itemsize > max_tile_bytes:
        tn //= 2
    return tn


def learnable_feature_dropping(x, sample_idx, u, w1, b1, w2, b2, *, temp=1.0):
    """Returns (x_dropped, possibilities[1,F], aug_ratio)."""
    n, f = x.shape

    # Row gather of the sampled nodes (tiny S x F) stays in plain JAX.
    xs = x[sample_idx]                                        # [S, F]

    # ---- kernel 1: per-feature possibilities (single small block) ----
    poss = pl.pallas_call(
        functools.partial(_poss_kernel, inv_temp=1.0 / temp),
        out_shape=jax.ShapeDtypeStruct((1, f), jnp.float32),
    )(xs, w1, b1, w2, b2, u)

    # ---- kernel 2: x * possibilities over large, lane-dense row tiles ----
    tn = _row_tile(n, f, x.dtype.itemsize)
    assert n % tn == 0 and (tn % 8 == 0 or tn == n)
    x_new = pl.pallas_call(
        _drop_kernel,
        out_shape=jax.ShapeDtypeStruct((n, f), x.dtype),
        grid=(n // tn,),
        in_specs=[
            pl.BlockSpec((tn, f), lambda i: (i, 0)),          # x row tile
            pl.BlockSpec((1, f), lambda i: (0, 0)),           # possibilities
        ],
        out_specs=pl.BlockSpec((tn, f), lambda i: (i, 0)),
        compiler_params=pltpu.CompilerParams(
            dimension_semantics=("parallel",)),
    )(x, poss)

    aug_ratio = 1.0 - jnp.sum(poss) / f
    return x_new, poss, aug_ratio


# ------------------------------- demo -------------------------------------- #

if __name__ == "__main__":
    key = jax.random.PRNGKey(0)
    k = jax.random.split(key, 8)

    # Small shapes consistent with the module.
    N, F = 128, 256          # nodes, feature dim
    S, HD = 32, 32           # input_dim (sampled nodes), hidden_dim
    NUM_EDGES = 64
    TEMP = 1.0

    # Graph data.
    x = jax.random.normal(k[0], (N, F), jnp.float32)
    edge_index = jax.random.randint(k[1], (2, NUM_EDGES), 0, N, dtype=jnp.int32)
    edge_weights = jnp.ones((NUM_EDGES,), jnp.float32)

    # rand_sample_idx = torch.randint(0, N, (input_dim,)) -> deterministic here.
    sample_idx = jax.random.randint(k[2], (S,), 0, N, dtype=jnp.int32)

    # Uniform noise driving the Gumbel samples (bounded away from {0,1}).
    u = jax.random.uniform(k[3], (1, F), jnp.float32,
                           minval=1e-6, maxval=1.0 - 1e-6)

    # prob_encoder = Linear(S, HD) -> ReLU -> Linear(HD, 1)  (PyTorch layouts).
    w1 = jax.random.normal(k[4], (HD, S), jnp.float32) / jnp.sqrt(S)
    b1 = 0.01 * jax.random.normal(k[5], (HD, 1), jnp.float32)
    w2 = jax.random.normal(k[6], (1, HD), jnp.float32) / jnp.sqrt(HD)
    b2 = 0.01 * jax.random.normal(k[7], (1, 1), jnp.float32)

    # ---- Pallas hot path ----
    x_new, poss, aug_ratio = learnable_feature_dropping(
        x, sample_idx, u, w1, b1, w2, b2, temp=TEMP)
    x_new, poss, aug_ratio = jax.block_until_ready((x_new, poss, aug_ratio))

    # Pure-JAX reference (mirrors the PyTorch expressions).
    attr = x[sample_idx].T                                    # [F, S]
    h_ref = jnp.maximum(attr @ w1.T + b1.T, 0.0)              # [F, HD]
    logits_ref = h_ref @ w2.T + b2                            # [F, 1]
    g_ref = -jnp.log(-jnp.log(u.T))                           # [F, 1]
    poss_ref = jax.nn.sigmoid((logits_ref + g_ref) / TEMP).T  # [1, F]
    x_ref = x * poss_ref

    assert poss.shape == (1, F) and x_new.shape == (N, F)
    assert jnp.allclose(poss, poss_ref, atol=1e-5, rtol=1e-5)
    assert jnp.allclose(x_new, x_ref, atol=1e-5, rtol=1e-5)
    assert bool(jnp.isfinite(aug_ratio))

    # Graph(x=x_new, edge_index, edge_weights).unfold() -> plain passthrough.
    g_out = (x_new, edge_index, edge_weights)
    jax.block_until_ready(g_out)
    # TODO(synk): torch's .item() host-sync for self.aug_ratio is kept as a
    # device scalar here (no host round-trip needed inside the hot path).

    print("KERNEL_OK")
</pallas_src>

<mosaic_0001>
module attributes {stable_mosaic.version = 11 : i64} {
  func.func @_poss_kernel(%arg0: memref<32x256xf32, #tpu.memory_space<vmem>>, %arg1: memref<32x32xf32, #tpu.memory_space<vmem>>, %arg2: memref<32x1xf32, #tpu.memory_space<vmem>>, %arg3: memref<1x32xf32, #tpu.memory_space<vmem>>, %arg4: memref<1x1xf32, #tpu.memory_space<vmem>>, %arg5: memref<1x256xf32, #tpu.memory_space<vmem>>, %arg6: memref<1x256xf32, #tpu.memory_space<vmem>>) attributes {dimension_semantics = [], scalar_prefetch = 0 : i64, scratch_operands = 0 : i64, tpu.core_type = #tpu.core_type<tc>} {
    %c0 = arith.constant 0 : index
    %c0_0 = arith.constant 0 : index
    %0 = vector.load %arg1[%c0, %c0_0] : memref<32x32xf32, #tpu.memory_space<vmem>>, vector<32x32xf32>
    %c0_1 = arith.constant 0 : index
    %c0_2 = arith.constant 0 : index
    %1 = vector.load %arg0[%c0_1, %c0_2] : memref<32x256xf32, #tpu.memory_space<vmem>>, vector<32x256xf32>
    %cst = arith.constant dense<0.000000e+00> : vector<32x256xf32>
    %2 = tpu.matmul %0, %1, %cst {dimension_numbers = #tpu.dot_dimension_numbers<[1], [0], [0], [1], [0, 0, 1, 1], [], []>} : vector<32x32xf32>, vector<32x256xf32>, vector<32x256xf32> -> vector<32x256xf32>
    %c0_3 = arith.constant 0 : index
    %c0_4 = arith.constant 0 : index
    %3 = vector.load %arg2[%c0_3, %c0_4] : memref<32x1xf32, #tpu.memory_space<vmem>>, vector<32x1xf32>
    %4 = vector.broadcast %3 : vector<32x1xf32> to vector<32x256xf32>
    %5 = arith.addf %2, %4 : vector<32x256xf32>
    %cst_5 = arith.constant 0.000000e+00 : f32
    %6 = vector.broadcast %cst_5 : f32 to vector<32x256xf32>
    %7 = arith.maximumf %5, %6 : vector<32x256xf32>
    %c0_6 = arith.constant 0 : index
    %c0_7 = arith.constant 0 : index
    %8 = vector.load %arg3[%c0_6, %c0_7] : memref<1x32xf32, #tpu.memory_space<vmem>>, vector<1x32xf32>
    %cst_8 = arith.constant dense<0.000000e+00> : vector<1x256xf32>
    %9 = tpu.matmul %8, %7, %cst_8 {dimension_numbers = #tpu.dot_dimension_numbers<[1], [0], [0], [1], [0, 0, 1, 1], [], []>} : vector<1x32xf32>, vector<32x256xf32>, vector<1x256xf32> -> vector<1x256xf32>
    %c0_9 = arith.constant 0 : index
    %c0_10 = arith.constant 0 : index
    %10 = vector.load %arg4[%c0_9, %c0_10] : memref<1x1xf32, #tpu.memory_space<vmem>>, vector<1x1xf32>
    %11 = vector.broadcast %10 : vector<1x1xf32> to vector<1x256xf32>
    %12 = arith.addf %9, %11 : vector<1x256xf32>
    %c0_11 = arith.constant 0 : index
    %c0_12 = arith.constant 0 : index
    %13 = vector.load %arg5[%c0_11, %c0_12] : memref<1x256xf32, #tpu.memory_space<vmem>>, vector<1x256xf32>
    %14 = math.log %13 : vector<1x256xf32>
    %cst_13 = arith.constant 0.000000e+00 : f32
    %15 = vector.broadcast %cst_13 : f32 to vector<1x256xf32>
    %16 = arith.subf %15, %14 : vector<1x256xf32>
    %17 = math.log %16 : vector<1x256xf32>
    %cst_14 = arith.constant 0.000000e+00 : f32
    %18 = vector.broadcast %cst_14 : f32 to vector<1x256xf32>
    %19 = arith.subf %18, %17 : vector<1x256xf32>
    %20 = arith.addf %12, %19 : vector<1x256xf32>
    %cst_15 = arith.constant 1.000000e+00 : f32
    %21 = vector.broadcast %cst_15 : f32 to vector<1x256xf32>
    %22 = arith.mulf %20, %21 : vector<1x256xf32>
    %23 = arith.negf %22 : vector<1x256xf32>
    %24 = math.exp %23 : vector<1x256xf32>
    %cst_16 = arith.constant 1.000000e+00 : f32
    %25 = vector.broadcast %cst_16 : f32 to vector<1x256xf32>
    %26 = arith.addf %25, %24 : vector<1x256xf32>
    %27 = arith.divf %25, %26 : vector<1x256xf32>
    %c0_17 = arith.constant 0 : index
    %c0_18 = arith.constant 0 : index
    %28 = vector.load %arg6[%c0_17, %c0_18] : memref<1x256xf32, #tpu.memory_space<vmem>>, vector<1x256xf32>
    tpu.vector_store %arg6[%c0_17, %c0_18], %27 {strides = array<i32>} : memref<1x256xf32, #tpu.memory_space<vmem>>, vector<1x256xf32>,
    return
  }
}

</mosaic_0001>

<llo_original>
// kernel: tpu_custom_call.1
$region0: #{tpu_custom_call.1}
  #allocation0 [shape = 'u32[]', space=smem, size = 0x4, offset = 0x4, fixed_abs, tag = 'smem constant byte address 0x4 - core index']
  #allocation1 [shape = 'u32[144,128]{1,0:T(1,128)}', space=vmem, size = 0x12000, scoped, tag = 'internal scratch']
  #allocation2 [shape = 'f32[1,1]{1,0:T(1,128)S(1)}', space=vmem, size = 0x200, scoped, tag = 'scoped memory for tpu_custom_call.1']
  %s0 = inlined_call_operand.hbm [shape: f32[32,256], index: 0, kind: input, shape index: {}]
  %s1 = inlined_call_operand.vmem [shape: f32[32,32], index: 1, kind: input, shape index: {}]
  %s2 = inlined_call_operand.vmem [shape: f32[32,1], index: 2, kind: input, shape index: {}]
  %s3 = inlined_call_operand.vmem [shape: f32[1,32], index: 3, kind: input, shape index: {}]
  %s4 = inlined_call_operand.<no memory space> [shape: f32[1,1], index: 4, kind: input, shape index: {}]
  %s5 = inlined_call_operand.vmem [shape: f32[1,256], index: 5, kind: input, shape index: {}]
  %s6 = inlined_call_operand.hbm [shape: f32[1,256], index: 6, kind: output, shape index: {}]
  %s7 = sld [smem:[#allocation0]]
  $region38: #{tpu_custom_call.1} parent=0
    _
  %s9 = ssub.s32 1, %s7
  %s10 = scalar_select 0, %s9, %s7
  %v11 = vstv %s4
  %12 = vst [vmem:[#allocation2] sm:$0x1] %v11
  $region1: #{tpu_custom_call.1} parent=0
    #allocation3 [shape = 'u8[32768]{0}', space=vmem, size = 0x8000, scoped, tag = 'input window, operand 0, single buffered']
    #allocation4 [shape = 's32[1]{0}', space=sflag, size = 0x4, scoped, tag = 'scoped memory for tpu_custom_call.1']
    #allocation5 [shape = 's32[1]{0}', space=sflag, size = 0x4, scoped, tag = 'scoped memory for tpu_custom_call.1']
    #allocation6 [shape = 'u8[1024]{0}', space=vmem, size = 0x400, scoped, tag = 'output window, operand 0, single buffered']
    %13 = vsyncpa [#allocation4], 0
    %14 = vsyncpa [#allocation5], 0
    // Predicated region
    $region2: #{tpu_custom_call.1} parent=1 // pred_check
      _
    $region3: #{tpu_custom_call.1} parent=1 // pred_check_branch
      %16 = sbr.rel (0) target = $region5
    $region4: #{tpu_custom_call.1} parent=1 // pred_region
      %s18 = ssub.s32 1024, 1024
      %19 = vsyncadd [#allocation4], %s18
      %s20 = sshll.u32 [#allocation3], 4
      %s21 = int_to_ptr.vmem [resolvable:$true] %s20
      %26 = dma.hbm_to_vmem [thread:$0]  %s0, 1024, %s21, [#allocation4], 256, 256, 16
    $region5: #{tpu_custom_call.1} parent=1 // pred_fallthru
      _
    // Predicated region
    $region6: #{tpu_custom_call.1} parent=1 // pred_check
      _
    $region7: #{tpu_custom_call.1} parent=1 // pred_check_branch
      %28 = sbr.rel (0) target = $region9
    $region8: #{tpu_custom_call.1} parent=1 // pred_region
      _
    $region9: #{tpu_custom_call.1} parent=1 // pred_fallthru
      _
    // Predicated region
    $region10: #{tpu_custom_call.1} parent=1 // pred_check
      _
    $region11: #{tpu_custom_call.1} parent=1 // pred_check_branch
      %30 = sbr.rel (0) target = $region13
    $region12: #{tpu_custom_call.1} parent=1 // pred_region
      _
    $region13: #{tpu_custom_call.1} parent=1 // pred_fallthru
      _
    // Predicated region
    $region14: #{tpu_custom_call.1} parent=1 // pred_check
      _
    $region15: #{tpu_custom_call.1} parent=1 // pred_check_branch
      %32 = sbr.rel (0) target = $region17
    $region16: #{tpu_custom_call.1} parent=1 // pred_region
      _
    $region17: #{tpu_custom_call.1} parent=1 // pred_fallthru
      _
    // Predicated region
    $region18: #{tpu_custom_call.1} parent=1 // pred_check
      _
    $region19: #{tpu_custom_call.1} parent=1 // pred_check_branch
      %34 = sbr.rel (0) target = $region21
    $region20: #{tpu_custom_call.1} parent=1 // pred_region
      _
    $region21: #{tpu_custom_call.1} parent=1 // pred_fallthru
      _
    // Predicated region
    $region22: #{tpu_custom_call.1} parent=1 // pred_check
      _
    $region23: #{tpu_custom_call.1} parent=1 // pred_check_branch
      %36 = sbr.rel (0) target = $region25
    $region24: #{tpu_custom_call.1} parent=1 // pred_region
      _
    $region25: #{tpu_custom_call.1} parent=1 // pred_fallthru
      _
    // Predicated region
    $region26: #{tpu_custom_call.1} parent=1 // pred_check
      _
    $region27: #{tpu_custom_call.1} parent=1 // pred_check_branch
      %38 = sbr.rel (0) target = $region29
    $region28: #{tpu_custom_call.1} parent=1 // pred_region
      %39 = dma.done [#allocation4], 1024
    $region29: #{tpu_custom_call.1} parent=1 // pred_fallthru
      _
    %v40 = vld [vmem:[%s1] sm:$0xff]
    %v41 = vld [vmem:[%s1 + $0x8] sm:$0xff]
    %v42 = vld [vmem:[%s1 + $0x10] sm:$0xff]
    %v43 = vld [vmem:[%s1 + $0x18] sm:$0xff]
    %v44 = vld [vmem:[#allocation3] sm:$0xff]
    %v45 = vld [vmem:[#allocation3 + $0x8] sm:$0xff]
    %v46 = vld [vmem:[#allocation3 + $0x10] sm:$0xff]
    %v47 = vld [vmem:[#allocation3 + $0x18] sm:$0xff]
    %v48 = vld [vmem:[#allocation3 + $0x20] sm:$0xff]
    %v49 = vld [vmem:[#allocation3 + $0x28] sm:$0xff]
    %v50 = vld [vmem:[#allocation3 + $0x30] sm:$0xff]
    %v51 = vld [vmem:[#allocation3 + $0x38] sm:$0xff]
    %v52 = vld [vmem:[%s2] sm:$0xff]
    %v53 = vld [vmem:[%s2 + $0x8] sm:$0xff]
    %v54 = vld [vmem:[%s2 + $0x10] sm:$0xff]
    %v55 = vld [vmem:[%s2 + $0x18] sm:$0xff]
    %57 = vset.pattern.permute.xlu0 0
    %58 = vperm.xlu0 %57, %v52
    %v59 = vpop.permute.xlu0 %58
    %62 = vset.pattern.permute.xlu0 0
    %63 = vperm.xlu0 %62, %v53
    %v64 = vpop.permute.xlu0 %63
    %67 = vset.pattern.permute.xlu0 0
    %68 = vperm.xlu0 %67, %v54
    %v69 = vpop.permute.xlu0 %68
    %72 = vset.pattern.permute.xlu0 0
    %73 = vperm.xlu0 %72, %v55
    %v74 = vpop.permute.xlu0 %73
    %vm76 = vcmask 261120
    %v78 = vsel %vm76, %v40, 0
    %v81 = vsel %vm76, %v41, 0
    %v84 = vsel %vm76, %v42, 0
    %v87 = vsel %vm76, %v43, 0
    %89 = vmatprep.subr.mxu0 %v45
    %90 = vmatpush1.msra.mxu0 %v44
    %91 = vmatprep.subr.mxu0 %v47
    %92 = vmatpush1.msra.mxu0 %v46
    %93 = vmatprep.subr.mxu0 %v49
    %94 = vmatpush1.msra.mxu0 %v48
    %95 = vmatprep.subr.mxu0 %v51
    %96 = vmatpush1.msra.mxu0 %v50
    %97 = vmatprep.subr.mxu0 0.0
    %98 = vmatpush1.msra.mxu0 0.0
    %99 = vmatprep.subr.mxu0 0.0
    %100 = vmatpush1.msra.mxu0 0.0
    %101 = vmatprep.subr.mxu0 0.0
    %102 = vmatpush1.msra.mxu0 0.0
    %103 = vmatprep.subr.mxu0 0.0
    %104 = vmatpush1.msra.mxu0 0.0
    %105 = vmatprep.subr.mxu0 0.0
    %106 = vmatpush1.msra.mxu0 0.0
    %107 = vmatprep.subr.mxu0 0.0
    %108 = vmatpush1.msra.mxu0 0.0
    %109 = vmatprep.subr.mxu0 0.0
    %110 = vmatpush1.msra.mxu0 0.0
    %111 = vmatprep.subr.mxu0 0.0
    %112 = vmatpush1.msra.mxu0 0.0
    %113 = vmatprep.subr.mxu0 0.0
    %114 = vmatpush1.msra.mxu0 0.0
    %115 = vmatprep.subr.mxu0 0.0
    %116 = vmatpush1.msra.mxu0 0.0
    %117 = vmatprep.subr.mxu0 0.0
    %118 = vmatpush1.msra.mxu0 0.0
    %119 = vmatprep.subr.mxu0 0.0
    %120 = vmatpush1.msra.mxu0 0.0
    %121 = vmatprep.subr.mxu0 0.0
    %122 = vmatpush1.msra.mxu0 0.0
    %123 = vmatprep.subr.mxu0 0.0
    %124 = vmatpush1.msra.mxu0 0.0
    %125 = vmatprep.subr.mxu0 0.0
    %126 = vmatpush1.msra.mxu0 0.0
    %127 = vmatprep.subr.mxu0 0.0
    %128 = vmatpush1.msra.mxu0 0.0
    %129 = vmatprep.subr.mxu0 0.0
    %130 = vmatpush1.msra.mxu0 0.0
    %131 = vmatprep.subr.mxu0 0.0
    %132 = vmatpush1.msra.mxu0 0.0
    %133 = vmatprep.subr.mxu0 0.0
    %134 = vmatpush1.msra.mxu0 0.0
    %135 = vmatprep.subr.mxu0 0.0
    %136 = vmatpush1.msra.mxu0 0.0
    %137 = vmatprep.subr.mxu0 0.0
    %138 = vmatpush1.msra.mxu0 0.0
    %139 = vmatprep.subr.mxu0 0.0
    %140 = vmatpush1.msra.mxu0 0.0
    %141 = vmatprep.subr.mxu0 0.0
    %142 = vmatpush1.msra.mxu0 0.0
    %143 = vmatprep.subr.mxu0 0.0
    %144 = vmatpush1.msra.mxu0 0.0
    %145 = vmatprep.subr.mxu0 0.0
    %146 = vmatpush1.msra.mxu0 0.0
    %147 = vmatprep.subr.mxu0 0.0
    %148 = vmatpush1.msra.mxu0 0.0
    %149 = vmatprep.subr.mxu0 0.0
    %150 = vmatpush1.msra.mxu0 0.0
    %151 = vmatprep.subr.mxu0 0.0
    %152 = vmatpush1.msra.mxu0 0.0
    %153 = vmatprep.mubr.f32.mxu0 0.0
    %154 = vmatmul.mubr.f32.gmra.mrb[0].mxu0 %v78
    %v155 = vpop.f32.mrb[0].mxu0
    %v156 = vadd.f32 %v59, %v155
    %v157 = vpop.f32.mrb[0].mxu0
    %v158 = vadd.f32 %v59, %v157
    %159 = vmatprep.mubr.f32.mxu0 0.0
    %160 = vmatmul.mubr.f32.gmra.mrb[0].mxu0 %v81
    %v161 = vpop.f32.mrb[0].mxu0
    %v162 = vadd.f32 %v64, %v161
    %v163 = vpop.f32.mrb[0].mxu0
    %v164 = vadd.f32 %v64, %v163
    %165 = vmatprep.mubr.f32.mxu0 0.0
    %166 = vmatmul.mubr.f32.gmra.mrb[0].mxu0 %v84
    %v167 = vpop.f32.mrb[0].mxu0
    %v168 = vadd.f32 %v69, %v167
    %v169 = vpop.f32.mrb[0].mxu0
    %v170 = vadd.f32 %v69, %v169
    %171 = vmatprep.mubr.f32.mxu0 0.0
    %172 = vmatmul.mubr.f32.gmra.mrb[0].mxu0 %v87
    %v173 = vpop.f32.mrb[0].mxu0
    %v174 = vadd.f32 %v74, %v173
    %v175 = vpop.f32.mrb[0].mxu0
    %v176 = vadd.f32 %v74, %v175
    %177 = vdwg.mxu0
    %v178 = vmax.f32 %v156, 0.0
    %v179 = vmax.f32 %v158, 0.0
    %v180 = vmax.f32 %v162, 0.0
    %v181 = vmax.f32 %v164, 0.0
    %v182 = vmax.f32 %v168, 0.0
    %v183 = vmax.f32 %v170, 0.0
    %v184 = vmax.f32 %v174, 0.0
    %v185 = vmax.f32 %v176, 0.0
    %v186 = vld [vmem:[%s3] sm:$0x1]
    %v187 = vld [vmem:[#allocation2] sm:$0x1]
    %189 = vset.pattern.permute.xlu0 0
    %190 = vperm.xlu0 %189, %v187
    %v191 = vpop.permute.xlu0 %190
    %v193 = vlaneseq
    %v194 = vshrl.u32 %v193, 7
    %v195 = vsub.s32 0, %v194
    %v196 = vrot.slane %v191, %v195
    %v198 = vsel %vm76, %v186, 0
    %200 = vmatprep.subr.mxu0 %v179
    %201 = vmatpush1.msra.mxu0 %v178
    %202 = vmatprep.subr.mxu0 %v181
    %203 = vmatpush1.msra.mxu0 %v180
    %204 = vmatprep.subr.mxu0 %v183
    %205 = vmatpush1.msra.mxu0 %v182
    %206 = vmatprep.subr.mxu0 %v185
    %207 = vmatpush1.msra.mxu0 %v184
    %208 = vmatprep.subr.mxu0 0.0
    %209 = vmatpush1.msra.mxu0 0.0
    %210 = vmatprep.subr.mxu0 0.0
    %211 = vmatpush1.msra.mxu0 0.0
    %212 = vmatprep.subr.mxu0 0.0
    %213 = vmatpush1.msra.mxu0 0.0
    %214 = vmatprep.subr.mxu0 0.0
    %215 = vmatpush1.msra.mxu0 0.0
    %216 = vmatprep.subr.mxu0 0.0
    %217 = vmatpush1.msra.mxu0 0.0
    %218 = vmatprep.subr.mxu0 0.0
    %219 = vmatpush1.msra.mxu0 0.0
    %220 = vmatprep.subr.mxu0 0.0
    %221 = vmatpush1.msra.mxu0 0.0
    %222 = vmatprep.subr.mxu0 0.0
    %223 = vmatpush1.msra.mxu0 0.0
    %224 = vmatprep.subr.mxu0 0.0
    %225 = vmatpush1.msra.mxu0 0.0
    %226 = vmatprep.subr.mxu0 0.0
    %227 = vmatpush1.msra.mxu0 0.0
    %228 = vmatprep.subr.mxu0 0.0
    %229 = vmatpush1.msra.mxu0 0.0
    %230 = vmatprep.subr.mxu0 0.0
    %231 = vmatpush1.msra.mxu0 0.0
    %232 = vmatprep.subr.mxu0 0.0
    %233 = vmatpush1.msra.mxu0 0.0
    %234 = vmatprep.subr.mxu0 0.0
    %235 = vmatpush1.msra.mxu0 0.0
    %236 = vmatprep.subr.mxu0 0.0
    %237 = vmatpush1.msra.mxu0 0.0
    %238 = vmatprep.subr.mxu0 0.0
    %239 = vmatpush1.msra.mxu0 0.0
    %240 = vmatprep.subr.mxu0 0.0
    %241 = vmatpush1.msra.mxu0 0.0
    %242 = vmatprep.subr.mxu0 0.0
    %243 = vmatpush1.msra.mxu0 0.0
    %244 = vmatprep.subr.mxu0 0.0
    %245 = vmatpush1.msra.mxu0 0.0
    %246 = vmatprep.subr.mxu0 0.0
    %247 = vmatpush1.msra.mxu0 0.0
    %248 = vmatprep.subr.mxu0 0.0
    %249 = vmatpush1.msra.mxu0 0.0
    %250 = vmatprep.subr.mxu0 0.0
    %251 = vmatpush1.msra.mxu0 0.0
    %252 = vmatprep.subr.mxu0 0.0
    %253 = vmatpush1.msra.mxu0 0.0
    %254 = vmatprep.subr.mxu0 0.0
    %255 = vmatpush1.msra.mxu0 0.0
    %256 = vmatprep.subr.mxu0 0.0
    %257 = vmatpush1.msra.mxu0 0.0
    %258 = vmatprep.subr.mxu0 0.0
    %259 = vmatpush1.msra.mxu0 0.0
    %260 = vmatprep.subr.mxu0 0.0
    %261 = vmatpush1.msra.mxu0 0.0
    %262 = vmatprep.subr.mxu0 0.0
    %263 = vmatpush1.msra.mxu0 0.0
    %264 = vmatprep.mubr.f32.mxu0 0.0
    %265 = vmatmul.mubr.f32.gmra.mrb[0].mxu0 %v198
    %v266 = vpop.f32.mrb[0].mxu0
    %v267 = vadd.f32 %v196, %v266
    %v268 = vpop.f32.mrb[0].mxu0
    %v269 = vadd.f32 %v196, %v268
    %270 = vdwg.mxu0
    %v271 = vld [vmem:[%s5] sm:$0x3]
    %v272 = vlog2.pop %v271
    %v273 = vmul.f32 %v272, 0.6931472
    %v274 = vsub.f32 0.0, %v273
    %v275 = vlog2.pop %v274
    %v276 = vmul.f32 %v275, 0.6931472
    %v277 = vsub.f32 0.0, %v276
    %v279 = vlaneseq
    %v280 = vshrl.u32 %v279, 7
    %v281 = vsub.s32 0, %v280
    %v282 = vrot.slane %v277, %v281
    %v283 = vlaneseq
    %v284 = vshrl.u32 %v283, 7
    %v285 = vsub.s32 1, %v284
    %v286 = vrot.slane %v277, %v285
    %v289 = vadd.f32 %v267, %v282
    %v290 = vadd.f32 %v269, %v286
    %v291 = vxor.u32 %v289, 2147483648
    %v292 = vxor.u32 %v290, 2147483648
    %v293 = vmul.f32 %v291, 1.442695
    %v294 = vpow.pop %v293
    %v295 = vmul.f32 %v292, 1.442695
    %v296 = vpow.pop %v295
    %v297 = vadd.f32 %v294, 1.0
    %v298 = vadd.f32 %v296, 1.0
    %v299 = vrcp.pop %v297
    %v300 = vmul.f32 1.0, %v299
    %v301 = vrcp.pop %v298
    %v302 = vmul.f32 1.0, %v301
    %v305 = vcombine.low %v300, %v302
    %v307 = vunpack.c.l.s4 1966171168
    %v308 = vunpack.c.0.s8 %v307
    %v309 = vlaneseq
    %v310 = vshrl.u32 %v309, 7
    %v311 = vsub.s32 %v308, %v310
    %v312 = vrot.slane %v305, %v311
    %v314 = vunpack.c.l.s4 1966171168
    %v315 = vunpack.c.0.s8 %v314
    %v316 = vlaneseq
    %v317 = vshrl.u32 %v316, 7
    %v318 = vsub.s32 %v315, %v317
    %v319 = vrot.slane %v312, %v318
    %v321 = vlaneseq
    %vm322 = vcmp.ge.s32.totalorder %v321, 0
    %vm323 = vcmp.lt.s32.totalorder %v321, 256
    %vm324 = vmand %vm322, %vm323
    %325 = vst.msk [vmem:[#allocation6] sm:$0x3] %vm324, %v319
    // Predicated region
    $region30: #{tpu_custom_call.1} parent=1 // pred_check
      _
    $region31: #{tpu_custom_call.1} parent=1 // pred_check_branch
      %327 = sbr.rel (0) target = $region33
    $region32: #{tpu_custom_call.1} parent=1 // pred_region
      %s329 = ssub.s32 32, 32
      %330 = vsyncadd [#allocation5], %s329
      %s332 = sshll.u32 [#allocation6], 4
      %s333 = int_to_ptr.vmem [resolvable:$true] %s332
      %335 = dma.vmem_to_hbm [thread:$0]  %s333, 32, %s6, [#allocation5]
    $region33: #{tpu_custom_call.1} parent=1 // pred_fallthru
      _
    // Predicated region
    $region34: #{tpu_custom_call.1} parent=1 // pred_check
      _
    $region35: #{tpu_custom_call.1} parent=1 // pred_check_branch
      %337 = sbr.rel (0) target = $region37
    $region36: #{tpu_custom_call.1} parent=1 // pred_region
      %338 = dma.done [#allocation5], 32
    $region37: #{tpu_custom_call.1} parent=1 // pred_fallthru
      _
    %339 = vsyncpa [#allocation4], 1
    %340 = vsyncpa [#allocation5], 1

</llo_original>
